<compile_context>
chip_gen: v6e
topology: v6e:2x2x1
jax: 0.10.0
libtpu: 0.0.40
codegen_flags: <defaults>
</compile_context>

<pallas_src>
import functools

import jax
import jax.numpy as jnp
from jax import lax
from jax.experimental import pallas as pl
from jax.experimental.pallas import tpu as pltpu


def _infonce_kernel(z2_ref, z1t_ref, o_ref, *, inv_temp, b_total, b_block,
                    t_block):
    z2 = z2_ref[...]    # (Bb, Tt, N) input dtype (bf16 stays bf16 for the MXU)
    z1t = z1t_ref[...]  # (Bb, N, S)  input dtype

    # logits[b, t, s] = <z2[b, t], z1[b, s]>  (== reference logits[b, s, t]).
    # Contraction over N: lane dim of z2 against sublane dim of z1t -- no
    # implicit transpose of the RHS tile.
    logits = lax.dot_general(
        z2, z1t,
        dimension_numbers=(((2,), (1,)), ((0,), (0,))),
        preferred_element_type=jnp.float32,
    )  # (Bb, Tt, S), f32 accumulation
    if inv_temp != 1.0:
        logits = logits * jnp.float32(inv_temp)

    # logsumexp over the class axis s (the lane axis), one value per (b, t).
    m = jnp.max(logits, axis=-1, keepdims=True)                       # (Bb,Tt,1)
    lse = m[..., 0] + jnp.log(jnp.sum(jnp.exp(logits - m), axis=-1))  # (Bb,Tt)

    # Diagonal logits[b, t, t]: iota-equality mask on the already-resident f32
    # logits + a lane reduce (no upcast / re-dot of the input tiles).
    t_base = pl.program_id(1) * t_block
    t_idx = lax.broadcasted_iota(jnp.int32, logits.shape, 1) + t_base
    s_idx = lax.broadcasted_iota(jnp.int32, logits.shape, 2)
    diag = jnp.sum(jnp.where(t_idx == s_idx, logits, 0.0), axis=-1)   # (Bb,Tt)

    # Mask batch rows that are only padding (B was padded up to a multiple of
    # b_block in the wrapper).
    b_idx = pl.program_id(0) * b_block + lax.broadcasted_iota(
        jnp.int32, lse.shape, 0)
    contrib = jnp.where(b_idx < b_total, lse - diag, 0.0)

    block_sum = jnp.sum(contrib)
    # Lane-dense (1, 1, 8, 128) output tile per grid step.
    o_ref[...] = jnp.full(o_ref.shape, block_sum, dtype=o_ref.dtype)


def _vmem_capacity_bytes():
    """Physical VMEM of the current chip, with a conservative fallback."""
    try:
        info = pltpu.get_tpu_info()
        cap = getattr(info, "vmem_capacity_bytes", None)
        if cap:
            return int(cap)
    except Exception:
        pass
    return 64 * 1024 * 1024  # v7x per-TensorCore VMEM: safe on every generation


def _per_batch_bytes(S, N, t_block, in_bytes):
    """Resident VMEM per batch element of one grid step (double-buffered)."""
    z2_tile = 2 * t_block * N * in_bytes       # (Tt, N) input tile, 2 buffers
    z1_tile = 2 * N * S * in_bytes             # (N, S) input tile, 2 buffers
    logits = 2 * t_block * S * 4               # f32 logits + exp temporary
    return z2_tile + z1_tile + logits


def _choose_t_block(S, N, in_bytes, budget):
    """Largest t-tile (divisor of S, multiple of 8 or S itself) fitting budget."""
    cands = {S}
    cands.update(d for d in range(8, S, 8) if S % d == 0)
    for t in sorted(cands, reverse=True):
        if _per_batch_bytes(S, N, t, in_bytes) <= budget:
            return t
    return min(cands)


def infonce_pallas(z1, z2, temperature: float = 1.0, *, batch_block=None,
                   t_block=None, mxu_bf16: bool = False):
    B, S, N = z1.shape
    assert z2.shape == (B, S, N)

    inv_temp = 1.0 / float(temperature)

    # Optional v6e/v7x throughput mode: feed the MXU bf16 operands for f32
    # inputs (changes rounding; off by default to keep bit-tight accuracy).
    if mxu_bf16 and z1.dtype == jnp.float32:
        z1 = z1.astype(jnp.bfloat16)
        z2 = z2.astype(jnp.bfloat16)
    in_bytes = jnp.dtype(z1.dtype).itemsize

    # ---- Per-generation VMEM policy --------------------------------------
    cap = _vmem_capacity_bytes()
    vmem_ceiling = (cap * 3) // 4                         # never ask for more
    block_budget = min(vmem_ceiling // 2, 48 * 1024 * 1024)
    # v7x (64 MiB):  ceiling 48 MiB, block budget 24 MiB
    # v5e/v6e (128): ceiling 96 MiB, block budget 48 MiB

    if t_block is None:
        t_block = _choose_t_block(S, N, in_bytes, block_budget)
    assert S % t_block == 0, "t_block must divide seq_len"
    num_t_blocks = S // t_block

    per_batch = _per_batch_bytes(S, N, t_block, in_bytes)
    if batch_block is None:
        batch_block = max(1, min(B, block_budget // max(per_batch, 1)))
        # Keep >= 2 grid steps so both v7x TensorCores get work.
        if num_t_blocks == 1 and batch_block >= B and B >= 2:
            batch_block = pl.cdiv(B, 2)
    batch_block = max(1, int(batch_block))

    num_b_blocks = pl.cdiv(B, batch_block)
    B_pad = num_b_blocks * batch_block
    if B_pad != B:
        pad = B_pad - B
        z1 = jnp.pad(z1, ((0, pad), (0, 0), (0, 0)))
        z2 = jnp.pad(z2, ((0, pad), (0, 0), (0, 0)))

    # Pre-transpose z1 -> (B_pad, N, S): layout plumbing done once in XLA, so
    # the kernel's matmul needs no per-block XLU transpose.
    z1t = jnp.swapaxes(z1, 1, 2)

    kernel = functools.partial(
        _infonce_kernel,
        inv_temp=inv_temp,
        b_total=B,
        b_block=batch_block,
        t_block=t_block,
    )

    # Advisory cost hint for the XLA scheduler.
    out_bytes = num_b_blocks * num_t_blocks * 8 * 128 * 4
    cost = pl.CostEstimate(
        flops=2 * B * S * S * N + 4 * B * S * S,
        transcendentals=B * S * S + B * S,
        bytes_accessed=(B_pad * S * N * in_bytes                 # z2
                        + num_t_blocks * B_pad * S * N * in_bytes  # z1t re-read
                        + out_bytes),
    )

    # Live VMEM for one grid step (double-buffered inputs + f32 logits).
    est = (2 * batch_block * (t_block * N + N * S) * in_bytes
           + 2 * batch_block * t_block * S * 4
           + 2 * 8 * 128 * 4)
    vmem_limit = int(min(max(2 * est, 32 * 1024 * 1024), vmem_ceiling))

    partials = pl.pallas_call(
        kernel,
        out_shape=jax.ShapeDtypeStruct((num_b_blocks, num_t_blocks, 8, 128),
                                       jnp.float32),
        grid_spec=pltpu.PrefetchScalarGridSpec(
            num_scalar_prefetch=0,
            grid=(num_b_blocks, num_t_blocks),
            in_specs=[
                pl.BlockSpec((batch_block, t_block, N), lambda i, j: (i, j, 0)),
                pl.BlockSpec((batch_block, N, S), lambda i, j: (i, 0, 0)),
            ],
            out_specs=pl.BlockSpec((1, 1, 8, 128), lambda i, j: (i, j, 0, 0)),
        ),
        compiler_params=pltpu.CompilerParams(
            dimension_semantics=("parallel", "parallel"),
            vmem_limit_bytes=vmem_limit,
        ),
        cost_estimate=cost,
    )(z2, z1t)

    # Mean over (batch, t) -- cheap scalar glue outside the kernel.  Padded
    # batch rows were zeroed inside the kernel, so the denominator is B*S.
    total = jnp.sum(partials[:, :, 0, 0])
    return total / (B * S)


def infonce_ref(z1, z2, temperature: float = 1.0):
    """Pure-JAX reference matching the PyTorch semantics."""
    logits = jnp.einsum("bsn,btn->bst", z1, z2) / temperature
    lse = jax.nn.logsumexp(logits, axis=1)           # over class dim s -> (B, T)
    diag = jnp.diagonal(logits, axis1=1, axis2=2)    # logits[b, t, t]  -> (B, T)
    return jnp.mean(lse - diag)


if __name__ == "__main__":
    key = jax.random.PRNGKey(0)
    k1, k2 = jax.random.split(key)

    B, S, N = 2, 8, 32
    temperature = 0.5

    z1 = jax.random.normal(k1, (B, S, N), dtype=jnp.float32)
    z2 = jax.random.normal(k2, (B, S, N), dtype=jnp.float32)

    loss = infonce_pallas(z1, z2, temperature)
    jax.block_until_ready(loss)

    ref = infonce_ref(z1, z2, temperature)
    assert jnp.allclose(loss, ref, rtol=1e-5, atol=1e-5), (loss, ref)

    print("KERNEL_OK")
</pallas_src>

<mosaic_0001>
module attributes {stable_mosaic.version = 11 : i64} {
  func.func @_infonce_kernel(%arg0: i32, %arg1: i32, %arg2: memref<1x8x32xf32, #tpu.memory_space<vmem>>, %arg3: memref<1x32x8xf32, #tpu.memory_space<vmem>>, %arg4: memref<1x1x8x128xf32, #tpu.memory_space<vmem>>) attributes {dimension_semantics = [#tpu.dimension_semantics<parallel>, #tpu.dimension_semantics<parallel>], iteration_bounds = array<i64: 2, 1>, scalar_prefetch = 0 : i64, scratch_operands = 0 : i64, tpu.core_type = #tpu.core_type<tc>, window_params = [{transform_indices = @transform_0, window_bounds = array<i64: 1, 8, 32>}, {transform_indices = @transform_1, window_bounds = array<i64: 1, 32, 8>}, {transform_indices = @transform_2, window_bounds = array<i64: 1, 1, 8, 128>}]} {
    %c0 = arith.constant 0 : index
    %c0_0 = arith.constant 0 : index
    %c0_1 = arith.constant 0 : index
    %0 = vector.load %arg2[%c0, %c0_0, %c0_1] : memref<1x8x32xf32, #tpu.memory_space<vmem>>, vector<1x8x32xf32>
    %c0_2 = arith.constant 0 : index
    %c0_3 = arith.constant 0 : index
    %c0_4 = arith.constant 0 : index
    %1 = vector.load %arg3[%c0_2, %c0_3, %c0_4] : memref<1x32x8xf32, #tpu.memory_space<vmem>>, vector<1x32x8xf32>
    %cst = arith.constant dense<0.000000e+00> : vector<1x8x8xf32>
    %2 = tpu.matmul %0, %1, %cst {dimension_numbers = #tpu.dot_dimension_numbers<[2], [1], [1], [2], [0, 0, 0, 1, 1, 2], [0], [0]>} : vector<1x8x32xf32>, vector<1x32x8xf32>, vector<1x8x8xf32> -> vector<1x8x8xf32>
    %cst_5 = arith.constant 2.000000e+00 : f32
    %3 = vector.broadcast %cst_5 : f32 to vector<1x8x8xf32>
    %4 = arith.mulf %2, %3 : vector<1x8x8xf32>
    %cst_6 = arith.constant dense<0xFF800000> : vector<1x8xf32>
    %5 = vector.multi_reduction <maximumf>, %4, %cst_6 [2] : vector<1x8x8xf32> to vector<1x8xf32>
    %6 = vector.shape_cast %5 : vector<1x8xf32> to vector<1x8x1xf32>
    %7 = vector.shape_cast %6 : vector<1x8x1xf32> to vector<1x8xf32>
    %8 = vector.broadcast %6 : vector<1x8x1xf32> to vector<1x8x8xf32>
    %9 = arith.subf %4, %8 : vector<1x8x8xf32>
    %10 = math.exp %9 : vector<1x8x8xf32>
    %cst_7 = arith.constant dense<0.000000e+00> : vector<1x8xf32>
    %11 = vector.multi_reduction <add>, %10, %cst_7 [2] : vector<1x8x8xf32> to vector<1x8xf32>
    %12 = math.log %11 : vector<1x8xf32>
    %13 = arith.addf %7, %12 : vector<1x8xf32>
    %c8_i32 = arith.constant 8 : i32
    %14 = arith.muli %arg1, %c8_i32 : i32
    %15 = tpu.iota {dimensions = array<i32: 1>} : vector<1x8x8xi32>
    %16 = vector.broadcast %14 : i32 to vector<1x8x8xi32>
    %17 = arith.addi %15, %16 : vector<1x8x8xi32>
    %18 = tpu.iota {dimensions = array<i32: 2>} : vector<1x8x8xi32>
    %19 = arith.cmpi eq, %17, %18 : vector<1x8x8xi32>
    %cst_8 = arith.constant 0.000000e+00 : f32
    %20 = vector.broadcast %cst_8 : f32 to vector<1x8x8xf32>
    %21 = arith.select %19, %4, %20 : vector<1x8x8xi1>, vector<1x8x8xf32>
    %cst_9 = arith.constant dense<0.000000e+00> : vector<1x8xf32>
    %22 = vector.multi_reduction <add>, %21, %cst_9 [2] : vector<1x8x8xf32> to vector<1x8xf32>
    %c1_i32 = arith.constant 1 : i32
    %23 = arith.muli %arg0, %c1_i32 : i32
    %24 = tpu.iota {dimensions = array<i32: 0>} : vector<1x8xi32>
    %25 = vector.broadcast %23 : i32 to vector<1x8xi32>
    %26 = arith.addi %25, %24 : vector<1x8xi32>
    %c2_i32 = arith.constant 2 : i32
    %27 = vector.broadcast %c2_i32 : i32 to vector<1x8xi32>
    %28 = arith.cmpi slt, %26, %27 : vector<1x8xi32>
    %29 = arith.subf %13, %22 : vector<1x8xf32>
    %cst_10 = arith.constant 0.000000e+00 : f32
    %30 = vector.broadcast %cst_10 : f32 to vector<1x8xf32>
    %31 = arith.select %28, %29, %30 : vector<1x8xi1>, vector<1x8xf32>
    %32 = vector.shape_cast %31 : vector<1x8xf32> to vector<1x1x8xf32>
    %cst_11 = arith.constant dense<0.000000e+00> : vector<1xf32>
    %33 = vector.multi_reduction <add>, %32, %cst_11 [1, 2] : vector<1x1x8xf32> to vector<1xf32>
    %34 = vector.shape_cast %33 : vector<1xf32> to vector<1x1x1xf32>
    %35 = vector.extract %34[0, 0, 0] : f32 from vector<1x1x1xf32>
    %36 = vector.broadcast %35 : f32 to vector<1x1x8x128xf32>
    %c0_12 = arith.constant 0 : index
    %c0_13 = arith.constant 0 : index
    %c0_14 = arith.constant 0 : index
    %c0_15 = arith.constant 0 : index
    %37 = vector.load %arg4[%c0_12, %c0_13, %c0_14, %c0_15] : memref<1x1x8x128xf32, #tpu.memory_space<vmem>>, vector<1x1x8x128xf32>
    tpu.vector_store %arg4[%c0_12, %c0_13, %c0_14, %c0_15], %36 {strides = array<i32>} : memref<1x1x8x128xf32, #tpu.memory_space<vmem>>, vector<1x1x8x128xf32>,
    return
  }
  func.func @transform_0(%arg0: i32, %arg1: i32) -> (i32, i32, i32) {
    %c0_i32 = arith.constant 0 : i32
    %c0_i32_0 = arith.constant 0 : i32
    return %arg0, %arg1, %c0_i32 : i32, i32, i32
  }
  func.func @transform_1(%arg0: i32, %arg1: i32) -> (i32, i32, i32) {
    %c0_i32 = arith.constant 0 : i32
    %c0_i32_0 = arith.constant 0 : i32
    %c0_i32_1 = arith.constant 0 : i32
    return %arg0, %c0_i32, %c0_i32_0 : i32, i32, i32
  }
  func.func @transform_2(%arg0: i32, %arg1: i32) -> (i32, i32, i32, i32) {
    %c0_i32 = arith.constant 0 : i32
    %c0_i32_0 = arith.constant 0 : i32
    %c0_i32_1 = arith.constant 0 : i32
    return %arg0, %arg1, %c0_i32, %c0_i32_0 : i32, i32, i32, i32
  }
}

</mosaic_0001>

<llo_original>
// kernel: tpu_custom_call.1
$region0: #{tpu_custom_call.1}
  #allocation0 [shape = 'u32[]', space=smem, size = 0x4, offset = 0x4, fixed_abs, tag = 'smem constant byte address 0x4 - core index']
  #allocation1 [shape = 'u32[144,128]{1,0:T(1,128)}', space=vmem, size = 0x12000, scoped, tag = 'internal scratch']
  %s0 = inlined_call_operand.vmem [shape: f32[2,8,32], index: 0, kind: input, shape index: {}]
  %s1 = inlined_call_operand.vmem [shape: f32[2,32,8], index: 1, kind: input, shape index: {}]
  %s2 = inlined_call_operand.hbm [shape: f32[2,1,8,128], index: 2, kind: output, shape index: {}]
  %s3 = sld [smem:[#allocation0]]
  $region41: #{tpu_custom_call.1} parent=0
    _
  %s5 = ssub.s32 1, %s3
  %s6 = scalar_select 0, %s5, %s3
  $region1: #{tpu_custom_call.1} parent=0
    #allocation2 [shape = 'u8[8192]{0}', space=vmem, size = 0x2000, scoped, tag = 'output window, operand 0']
    #allocation3 [shape = 's32[2]{0}', space=sflag, size = 0x8, scoped, tag = 'scoped memory for tpu_custom_call.1']
    %7 = vsyncpa [#allocation3], 0
    %s8 = scalar_lea.sflag [#allocation3], 1
    %9 = vsyncpa %s8, 0
    loop: start=0, step=1, limit=4
    $region2: #{tpu_custom_call.1} parent=1 // loop_pre_header
      _
    $region3: #{tpu_custom_call.1} parent=1 // loop_header
      %s11 = sphi 0, %s15
      %p12 = scmp.ge.s32.totalorder %s11, 4
      %s18 = sphi 0, %s30
      %s19 = sphi 0, %s26
      %s20 = sphi 0, %s18
      %s21 = sphi 0, %s19
      %s22 = sphi 0, %s20
      %s23 = sphi 0, %s21
      %s35 = sphi 0, %s37
      %s38 = sphi 0, %s35
      %s39 = sphi 0, %s38
      %s55 = sphi 0, %s39
      %s61 = sphi 0, %s63
      %s64 = sphi 0, %s61
      %s65 = sphi 0, %s64
      %s81 = sphi 0, %s65
      %s89 = sphi 0, %s91
      %s92 = sphi 0, %s89
      %s93 = sphi 0, %s92
      %s109 = sphi 0, %s93
    $region4: #{tpu_custom_call.1} parent=1 // loop_header_branch
      %14 = sbr.rel (%p12) target = $region8
    $region5: #{tpu_custom_call.1} parent=1 // loop_body
      %s16 = ssub.s32 %s11, 1
      %s17 = ssub.s32 %s11, 2
      %s24 = sadd.s32 1, %s19
      %p25 = scmp.ge.s32.totalorder %s24, 1
      %s26 = scalar_select %p25, 0, %s24
      %s27 = sadd.s32 1, %s18
      %s28 = scalar_select %p25, %s27, %s18
      %p29 = scmp.ge.s32.totalorder %s28, 2
      %s30 = scalar_select %p29, 0, %s28
      %s31 = ssub.s32 %s18, %s30
      %s32 = ssub.s32 %s19, %s26
      %s33 = sor.u32 %s31, %s32
      %p34 = scmp.eq.s32.totalorder %s33, 0
      %s36 = sadd.s32 %s35, 1
      %s37 = scalar_select %p34, %s35, %s36
      %p40 = pneg %p34
      %p41 = scmp.eq.s32.totalorder %s11, 1
      %p42 = por %p40, %p41
      %p43 = scmp.ne.s32.totalorder %s35, %s38
      %p44 = scmp.eq.s32.totalorder %s11, 0
      %p45 = por %p43, %p44
      %p46 = scmp.ne.s32.totalorder %s35, %s38
      %p47 = scmp.eq.s32.totalorder %s16, 1
      %p48 = por %p46, %p47
      %p49 = scmp.ne.s32.totalorder %s38, %s39
      %p50 = scmp.eq.s32.totalorder %s16, 0
      %p51 = por %p49, %p50
      %p52 = scmp.ne.s32.totalorder %s38, %s39
      %p53 = scmp.eq.s32.totalorder %s17, 1
      %p54 = por %p52, %p53
      %p56 = scmp.ne.s32.totalorder %s39, %s55
      %p57 = scmp.eq.s32.totalorder %s17, 0
      %p58 = por %p56, %p57
      %s59 = ssub.s32 %s18, %s30
      %p60 = scmp.eq.s32.totalorder %s59, 0
      %s62 = sadd.s32 %s61, 1
      %s63 = scalar_select %p60, %s61, %s62
      %p66 = pneg %p60
      %p67 = scmp.eq.s32.totalorder %s11, 1
      %p68 = por %p66, %p67
      %p69 = scmp.ne.s32.totalorder %s61, %s64
      %p70 = scmp.eq.s32.totalorder %s11, 0
      %p71 = por %p69, %p70
      %p72 = scmp.ne.s32.totalorder %s61, %s64
      %p73 = scmp.eq.s32.totalorder %s16, 1
      %p74 = por %p72, %p73
      %p75 = scmp.ne.s32.totalorder %s64, %s65
      %p76 = scmp.eq.s32.totalorder %s16, 0
      %p77 = por %p75, %p76
      %p78 = scmp.ne.s32.totalorder %s64, %s65
      %p79 = scmp.eq.s32.totalorder %s17, 1
      %p80 = por %p78, %p79
      %p82 = scmp.ne.s32.totalorder %s65, %s81
      %p83 = scmp.eq.s32.totalorder %s17, 0
      %p84 = por %p82, %p83
      %s85 = ssub.s32 %s18, %s30
      %s86 = ssub.s32 %s19, %s26
      %s87 = sor.u32 %s85, %s86
      %p88 = scmp.eq.s32.totalorder %s87, 0
      %s90 = sadd.s32 %s89, 1
      %s91 = scalar_select %p88, %s89, %s90
      %p94 = pneg %p88
      %p95 = scmp.eq.s32.totalorder %s11, 1
      %p96 = por %p94, %p95
      %p97 = scmp.ne.s32.totalorder %s89, %s92
      %p98 = scmp.eq.s32.totalorder %s11, 0
      %p99 = por %p97, %p98
      %p100 = scmp.ne.s32.totalorder %s89, %s92
      %p101 = scmp.eq.s32.totalorder %s16, 1
      %p102 = por %p100, %p101
      %p103 = scmp.ne.s32.totalorder %s92, %s93
      %p104 = scmp.eq.s32.totalorder %s16, 0
      %p105 = por %p103, %p104
      %p106 = scmp.ne.s32.totalorder %s92, %s93
      %p107 = scmp.eq.s32.totalorder %s17, 1
      %p108 = por %p106, %p107
      %p110 = scmp.ne.s32.totalorder %s93, %s109
      %p111 = scmp.eq.s32.totalorder %s17, 0
      %p112 = por %p110, %p111
      %p113 = scmp.le.s32.totalorder 1, %s11
      %p114 = scmp.lt.s32.totalorder %s11, 3
      %p115 = pnand %p113, %p114
      %p116 = pneg %p115
      // Predicated region
      $region9: #{tpu_custom_call.1} parent=5 // pred_check
        _
      $region10: #{tpu_custom_call.1} parent=5 // pred_check_branch
        %118 = sbr.rel (%p115) target = $region12
      $region11: #{tpu_custom_call.1} parent=5 // pred_region
        %s119 = ssub.s32 %s11, 1
      $region12: #{tpu_custom_call.1} parent=5 // pred_fallthru
        _
      %p120 = scmp.lt.s32.totalorder %s11, 2
      // Predicated region
      $region13: #{tpu_custom_call.1} parent=5 // pred_check
        %p121 = pneg %p120
      $region14: #{tpu_custom_call.1} parent=5 // pred_check_branch
        %123 = sbr.rel (%p121) target = $region16
      $region15: #{tpu_custom_call.1} parent=5 // pred_region
        // Predicated region
        $region17: #{tpu_custom_call.1} parent=15 // pred_check
          %p124 = pneg %p45
        $region18: #{tpu_custom_call.1} parent=15 // pred_check_branch
          %126 = sbr.rel (%p124) target = $region20
        $region19: #{tpu_custom_call.1} parent=15 // pred_region
          %p127 = scmp.lt.s32.totalorder %s18, 1
          %s128 = scalar_select %p127, %s18, 1
          %p129 = scmp.lt.s32.totalorder %s19, 0
          %s130 = scalar_select %p129, %s19, 0
          %s131 = sadd.s32 %s130, %s128
          %s132 = smul.addr %s131, 8
          %s133 = scalar_lea.vmem %s0, %s132
        $region20: #{tpu_custom_call.1} parent=15 // pred_fallthru
          _
        // Predicated region
        $region21: #{tpu_custom_call.1} parent=15 // pred_check
          %p134 = pneg %p71
        $region22: #{tpu_custom_call.1} parent=15 // pred_check_branch
          %136 = sbr.rel (%p134) target = $region24
        $region23: #{tpu_custom_call.1} parent=15 // pred_region
          %p137 = scmp.lt.s32.totalorder %s18, 1
          %s138 = scalar_select %p137, %s18, 1
          %s139 = smul.addr %s138, 4
          %s140 = smul.addr %s139, 8
          %s141 = scalar_lea.vmem %s1, %s140
        $region24: #{tpu_custom_call.1} parent=15 // pred_fallthru
          _
      $region16: #{tpu_custom_call.1} parent=5 // pred_fallthru
        _
      %p142 = scmp.le.s32.totalorder 1, %s11
      %p143 = scmp.lt.s32.totalorder %s11, 3
      %p144 = pnand %p142, %p143
      %p145 = pneg %p144
      // Predicated region
      $region25: #{tpu_custom_call.1} parent=5 // pred_check
        _
      $region26: #{tpu_custom_call.1} parent=5 // pred_check_branch
        %147 = sbr.rel (%p144) target = $region28
      $region27: #{tpu_custom_call.1} parent=5 // pred_region
        %s148 = ssub.s32 %s11, 1
        %p149 = scmp.lt.s32.totalorder %s20, 1
        %s150 = scalar_select %p149, %s20, 1
        %p151 = scmp.lt.s32.totalorder %s21, 0
        %s152 = scalar_select %p151, %s21, 0
        %s153 = sadd.s32 %s152, %s150
        %s154 = smul.addr %s153, 8
        %s155 = scalar_lea.vmem %s0, %s154
        %p156 = pneg %p51
        %p157 = pneg %p48
        %p158 = scmp.lt.s32.totalorder %s20, 1
        %s159 = scalar_select %p158, %s20, 1
        %s160 = smul.addr %s159, 4
        %s161 = smul.addr %s160, 8
        %s162 = scalar_lea.vmem %s1, %s161
        %p163 = pneg %p77
        %p164 = pneg %p74
        %p165 = pneg %p105
        %p166 = pneg %p102
        %s167 = sand.u32 %s92, 1
        %s168 = scalar_lea.sflag [#allocation3], %s167
        %s169 = sand.u32 %s92, 1
        %s170 = smul.addr %s169, 8
        %s171 = scalar_lea.vmem [#allocation2], %s170
        %p172 = scmp.lt.s32.totalorder %s20, 1
        %s173 = scalar_select %p172, %s20, 1
        %p174 = scmp.lt.s32.totalorder %s21, 0
        %s175 = scalar_select %p174, %s21, 0
        %s176 = sadd.s32 %s175, %s173
        %s177 = smul.addr %s176, 8
        %s178 = scalar_lea.vmem %s0, %s177
        %p179 = scmp.lt.s32.totalorder %s20, 1
        %s180 = scalar_select %p179, %s20, 1
        %s181 = smul.addr %s180, 4
        %s182 = smul.addr %s181, 8
        %s183 = scalar_lea.vmem %s1, %s182
        %v184 = vld [vmem:[%s178] sm:$0xff]
        %v185 = vld [vmem:[%s183] sm:$0xff]
        %v186 = vld [vmem:[%s183 + $0x8] sm:$0xff]
        %v187 = vld [vmem:[%s183 + $0x10] sm:$0xff]
        %v188 = vld [vmem:[%s183 + $0x18] sm:$0xff]
        %vm189 = vcmask 261120
        %v191 = vsel %vm189, %v184, 0
        %193 = vmatprep.subr.mxu0 0.0
        %194 = vmatpush1.msra.mxu0 0.0
        %195 = vmatprep.subr.mxu0 0.0
        %196 = vmatpush1.msra.mxu0 0.0
        %197 = vmatprep.subr.mxu0 0.0
        %198 = vmatpush1.msra.mxu0 0.0
        %199 = vmatprep.subr.mxu0 0.0
        %200 = vmatpush1.msra.mxu0 0.0
        %201 = vmatprep.subr.mxu0 0.0
        %202 = vmatpush1.msra.mxu0 0.0
        %203 = vmatprep.subr.mxu0 0.0
        %204 = vmatpush1.msra.mxu0 0.0
        %205 = vmatprep.subr.mxu0 0.0
        %206 = vmatpush1.msra.mxu0 0.0
        %207 = vmatprep.subr.mxu0 0.0
        %208 = vmatpush1.msra.mxu0 0.0
        %209 = vmatprep.subr.mxu0 0.0
        %210 = vmatpush1.msra.mxu0 0.0
        %211 = vmatprep.subr.mxu0 0.0
        %212 = vmatpush1.msra.mxu0 0.0
        %213 = vmatprep.subr.mxu0 0.0
        %214 = vmatpush1.msra.mxu0 0.0
        %215 = vmatprep.subr.mxu0 0.0
        %216 = vmatpush1.msra.mxu0 0.0
        %217 = vmatprep.subr.mxu0 0.0
        %218 = vmatpush1.msra.mxu0 %v188
        %219 = vmatprep.subr.mxu0 0.0
        %220 = vmatpush1.msra.mxu0 %v187
        %221 = vmatprep.subr.mxu0 0.0
        %222 = vmatpush1.msra.mxu0 %v186
        %223 = vmatprep.subr.mxu0 0.0
        %224 = vmatpush1.msra.mxu0 %v185
        %225 = vmatprep.subr.mxu0 0.0
        %226 = vmatpush2.msra.mxu0 0.0
        %227 = vmatprep.subr.mxu0 0.0
        %228 = vmatpush2.msra.mxu0 0.0
        %229 = vmatprep.subr.mxu0 0.0
        %230 = vmatpush2.msra.mxu0 0.0
        %231 = vmatprep.subr.mxu0 0.0
        %232 = vmatpush2.msra.mxu0 0.0
        %233 = vmatprep.subr.mxu0 0.0
        %234 = vmatpush2.msra.mxu0 0.0
        %235 = vmatprep.subr.mxu0 0.0
        %236 = vmatpush2.msra.mxu0 0.0
        %237 = vmatprep.subr.mxu0 0.0
        %238 = vmatpush2.msra.mxu0 0.0
        %239 = vmatprep.subr.mxu0 0.0
        %240 = vmatpush2.msra.mxu0 0.0
        %241 = vmatprep.subr.mxu0 0.0
        %242 = vmatpush2.msra.mxu0 0.0
        %243 = vmatprep.subr.mxu0 0.0
        %244 = vmatpush2.msra.mxu0 0.0
        %245 = vmatprep.subr.mxu0 0.0
        %246 = vmatpush2.msra.mxu0 0.0
        %247 = vmatprep.subr.mxu0 0.0
        %248 = vmatpush2.msra.mxu0 0.0
        %249 = vmatprep.subr.mxu0 0.0
        %250 = vmatpush2.msra.mxu0 0.0
        %251 = vmatprep.subr.mxu0 0.0
        %252 = vmatpush2.msra.mxu0 0.0
        %253 = vmatprep.subr.mxu0 0.0
        %254 = vmatpush2.msra.mxu0 0.0
        %255 = vmatprep.subr.mxu0 0.0
        %256 = vmatpush2.msra.mxu0 0.0
        %257 = vmatprep.mubr.f32.mxu0 0.0
        %258 = vmatmul.mubr.f32.gmra.mxu0 %v191
        %v259 = vpop.f32.mrf.mxu0
        %v260 = vadd.f32 0.0, %v259
        %v261 = vpop.f32.mrf.mxu0
        %262 = vdwg.mxu0
        %v263 = vmul.f32 %v260, 2.0
        %vm264 = vcmask 64512
        %v265 = vsel %vm264, %v263, -inf
        %266 = vmax.xlane.f32.xlu0 %v265
        %v267 = vpop.xlane.xlu0 %266
        %v268 = vsub.f32 %v263, %v267
        %v269 = vmul.f32 %v268, 1.442695
        %v270 = vpow.pop %v269
        %v271 = vsel %vm264, %v270, 0.0
        %272 = vadd.xlane.f32.xlu0 %v271
        %v273 = vpop.xlane.xlu0 %272
        %v274 = vlog2.pop %v273
        %v275 = vmul.f32 %v274, 0.6931472
        %v276 = vadd.f32 %v267, %v275
        %s277 = smul.u32 %s21, 8
        %v278 = vlaneseq
        %v279 = vshrl.u32 %v278, 7
        %v280 = vstv %s277
        %v281 = vadd.s32 %v279, %v280
        %v282 = vlaneseq
        %v283 = vand.u32 %v282, 127
        %vm284 = vcmp.eq.s32.totalorder %v281, %v283
        %v285 = vsel %vm284, %v263, 0.0
        %v286 = vsel %vm264, %v285, 0.0
        %287 = vadd.xlane.f32.xlu0 %v286
        %v288 = vpop.xlane.xlu0 %287
        %v289 = vstv %s20
        %v290 = vadd.s32 %v289, %v279
        %vm291 = vcmp.lt.s32.totalorder %v290, 2
        %v292 = vsub.f32 %v276, %v288
        %v294 = vlaneseq
        %v295 = vshrl.u32 %v294, 7
        %v296 = vsub.s32 %v283, %v295
        %v297 = vrot.slane %v292, %v296
        %v299 = vsel %vm291, %v297, 0.0
        %vm300 = vcmask 57344
        %v301 = vsel %vm300, %v299, 0.0
        %302 = vadd.xlane.f32.xlu0 %v301
        %v303 = vpop.xlane.xlu0 %302
        %v304 = vrot.slane %v303, 4
        %v305 = vadd.f32 %v303, %v304
        %v306 = vrot.slane %v305, 2
        %v307 = vadd.f32 %v305, %v306
        %v308 = vrot.slane %v307, 1
        %v309 = vadd.f32 %v307, %v308
        %s310 = vtos %v309
        %v311 = vstv %s310
        %312 = vst [vmem:[%s171] sm:$0xff] %v311
        %s313 = sand.u32 %s92, 1
        %s314 = scalar_lea.sflag [#allocation3], %s313
        %s315 = sand.u32 %s92, 1
        %s316 = smul.addr %s315, 8
        %s317 = scalar_lea.vmem [#allocation2], %s316
        // Predicated region
        $region29: #{tpu_custom_call.1} parent=27 // pred_check
          %p318 = pneg %p102
        $region30: #{tpu_custom_call.1} parent=27 // pred_check_branch
          %320 = sbr.rel (%p318) target = $region32
        $region31: #{tpu_custom_call.1} parent=27 // pred_region
          %s322 = ssub.s32 128, 128
          %323 = vsyncadd %s314, %s322
          %s324 = sadd.s32 %s21, %s20
          %s325 = smul.addr %s324, 128
          %s326 = scalar_lea.hbm %s2, %s325
          %s328 = sshll.u32 %s317, 4
          %s329 = int_to_ptr.vmem [resolvable:$true] %s328
          %331 = dma.vmem_to_hbm [thread:$0]  %s329, 128, %s326, %s314
        $region32: #{tpu_custom_call.1} parent=27 // pred_fallthru
          _
      $region28: #{tpu_custom_call.1} parent=5 // pred_fallthru
        _
      %p332 = scmp.le.s32.totalorder 2, %s11
      // Predicated region
      $region33: #{tpu_custom_call.1} parent=5 // pred_check
        %p333 = pneg %p332
      $region34: #{tpu_custom_call.1} parent=5 // pred_check_branch
        %335 = sbr.rel (%p333) target = $region36
      $region35: #{tpu_custom_call.1} parent=5 // pred_region
        %s336 = ssub.s32 %s11, 2
        // Predicated region
        $region37: #{tpu_custom_call.1} parent=35 // pred_check
          %p337 = pneg %p108
        $region38: #{tpu_custom_call.1} parent=35 // pred_check_branch
          %339 = sbr.rel (%p337) target = $region40
        $region39: #{tpu_custom_call.1} parent=35 // pred_region
          %s340 = sand.u32 %s93, 1
          %s341 = scalar_lea.sflag [#allocation3], %s340
          %s342 = sand.u32 %s93, 1
          %s343 = smul.addr %s342, 8
          %s344 = scalar_lea.vmem [#allocation2], %s343
          %345 = dma.done %s341, 128
        $region40: #{tpu_custom_call.1} parent=35 // pred_fallthru
          _
      $region36: #{tpu_custom_call.1} parent=5 // pred_fallthru
        _
    $region6: #{tpu_custom_call.1} parent=1 // loop_footer
      %s15 = sadd.s32 1, %s11
    $region7: #{tpu_custom_call.1} parent=1 // loop_footer_branch
      %10 = sbr.rel target = $region3
    $region8: #{tpu_custom_call.1} parent=1 // loop_exit
      _
    %346 = vsyncpa [#allocation3], 1
    %s347 = scalar_lea.sflag [#allocation3], 1
    %348 = vsyncpa %s347, 1

</llo_original>
